<compile_context>
chip_gen: v5e
topology: v5e:2x2
jax: 0.10.0
libtpu: 0.0.40
codegen_flags: <defaults>
</compile_context>

<pallas_src>
import functools

import jax
import jax.numpy as jnp
from jax.experimental import pallas as pl
from jax.experimental.pallas import tpu as pltpu


# ------------------------------ hardware knobs --------------------------------

def _round_up(x, m):
    return ((x + m - 1) // m) * m


def _vmem_limit_bytes():
    """Scoped-VMEM limit ~3/4 of physical (96 MiB v5e/v6e, 48 MiB v7x)."""
    cap = 64 * 1024 * 1024
    try:
        info = pltpu.get_tpu_info()
        cap = int(getattr(info, "vmem_capacity_bytes", cap) or cap)
    except Exception:
        pass
    return int(min(cap * 3 // 4, 112 * 1024 * 1024))


_VMEM_LIMIT = _vmem_limit_bytes()
_BIG_VMEM = _VMEM_LIMIT >= 80 * 1024 * 1024
_TS_CAP = 1024 if _BIG_VMEM else 512    # src tile cap (lane axis of the mask)
_TD_CAP = 512 if _BIG_VMEM else 256     # dst tile cap (int8-packed sublanes)
_ROW_PAD = 128                          # node counts padded to lane multiples


def _pick_tile(n_pad, align, cap):
    """Largest tile <= cap, multiple of align, dividing n_pad (n_pad % 128 == 0)."""
    t = cap
    while t > align and n_pad % t:
        t //= 2
    return t


# --------------- kernel 1: batched type projection + alpha halves -------------

def _proj_alpha_kernel(x_ref, w_ref, b_ref, a_ref, h_ref, al_ref):
    # x:[bm,Fin]bf16  w:[Fin,hid]bf16  b:[1,hid]f32  a:[hid,K]bf16
    # -> h:[bm,hid]bf16 (lane dense)   alpha:[bm,K]f32
    h = jnp.dot(x_ref[...], w_ref[...], preferred_element_type=jnp.float32) + b_ref[...]
    h_ref[...] = h.astype(h_ref.dtype)
    # fused per-(edge type, side, head) attention-logit halves: alpha = h @ A
    al_ref[...] = jnp.dot(h.astype(jnp.bfloat16), a_ref[...],
                          preferred_element_type=jnp.float32)


def pallas_type_projection(x_dict, proj_w, proj_b, att_mats, node_types, k_pad):
    """All node-type projections (+ fused alpha halves) in ONE gridded call."""
    n_types = len(node_types)
    in_ch = x_dict[node_types[0]].shape[1]
    hid = proj_w[node_types[0]].shape[1]
    counts = [x_dict[nt].shape[0] for nt in node_types]
    n_common = max(_round_up(c, _ROW_PAD) for c in counts)
    bm = _pick_tile(n_common, 128, 512)
    # TODO(synk): tile the Fin (contraction) axis with a VMEM f32 accumulator for large in_channels.
    # TODO(synk): ragged per-type row counts to avoid wasted blocks on skewed node counts.

    xs = jnp.stack([
        jnp.pad(x_dict[nt], ((0, n_common - x_dict[nt].shape[0]), (0, 0)))
        for nt in node_types]).astype(jnp.bfloat16)                      # [T,n,Fin]
    ws = jnp.stack([proj_w[nt] for nt in node_types]).astype(jnp.bfloat16)
    bs = jnp.stack([proj_b[nt].reshape(1, hid) for nt in node_types])    # f32
    ams = jnp.stack([att_mats[nt] for nt in node_types]).astype(jnp.bfloat16)

    h_all, a_all = pl.pallas_call(
        _proj_alpha_kernel,
        out_shape=[jax.ShapeDtypeStruct((n_types, n_common, hid), jnp.bfloat16),
                   jax.ShapeDtypeStruct((n_types, n_common, k_pad), jnp.float32)],
        grid=(n_types, n_common // bm),
        in_specs=[
            pl.BlockSpec((None, bm, in_ch), lambda t, i: (t, i, 0)),
            pl.BlockSpec((None, in_ch, hid), lambda t, i: (t, 0, 0)),
            pl.BlockSpec((None, 1, hid), lambda t, i: (t, 0, 0)),
            pl.BlockSpec((None, hid, k_pad), lambda t, i: (t, 0, 0)),
        ],
        out_specs=[pl.BlockSpec((None, bm, hid), lambda t, i: (t, i, 0)),
                   pl.BlockSpec((None, bm, k_pad), lambda t, i: (t, i, 0))],
        compiler_params=pltpu.CompilerParams(
            dimension_semantics=("parallel", "parallel"),
            vmem_limit_bytes=_VMEM_LIMIT),
    )(xs, ws, bs, ams)
    return h_all, a_all


# ----------------- kernel 2: flash-style GAT edge attention -------------------

def _edge_attn_kernel(heads, dim, xs_ref, asrc_ref, adst_ref, mask_ref, o_ref,
                      m_sc, l_sc, acc_sc):
    # xs:[ts,hid]bf16  asrc:[H,ts]f32  adst:[td,H]f32  mask:[td,ts]int8
    # o:[td,hid]bf16   m/l:[H,td,1]f32  acc:[td,hid]f32 (lane dense)
    si = pl.program_id(1)

    @pl.when(si == 0)
    def _():
        m_sc[...] = jnp.full(m_sc.shape, -jnp.inf, jnp.float32)
        l_sc[...] = jnp.zeros(l_sc.shape, jnp.float32)
        acc_sc[...] = jnp.zeros(acc_sc.shape, jnp.float32)

    edge = mask_ref[...] != 0                       # int8 mask used natively
    xs = xs_ref[...]                                # [ts, hid] bf16
    adst = adst_ref[...]                            # [td, H]  f32
    asrc = asrc_ref[...]                            # [H, ts]  f32

    for h in range(heads):                          # static unroll (H is small)
        lo = h * dim
        hi = lo + dim
        # rank-1 logits from precomputed alpha halves (nothing recomputed per tile)
        logit = adst[:, h:h + 1] + asrc[h:h + 1, :]          # [td, ts] f32
        logit = jnp.where(logit > 0, logit, 0.2 * logit)     # LeakyReLU(0.2)
        logit = jnp.where(edge, logit, jnp.float32(-1e30))

        # online softmax (f32 statistics)
        m_prev = m_sc[h]                                      # [td, 1]
        m_new = jnp.maximum(m_prev, jnp.max(logit, axis=-1, keepdims=True))
        scale = jnp.exp(m_prev - m_new)
        p = jnp.where(edge, jnp.exp(logit - m_new), 0.0)      # [td, ts] f32
        l_sc[h] = scale * l_sc[h] + jnp.sum(p, axis=-1, keepdims=True)
        m_sc[h] = m_new
        # lane-dense accumulator: each head owns a static lane slice (MXU, bf16 operands)
        acc_sc[:, lo:hi] = scale * acc_sc[:, lo:hi] + jnp.dot(
            p.astype(jnp.bfloat16), xs[:, lo:hi],
            preferred_element_type=jnp.float32)

    @pl.when(si == pl.num_programs(1) - 1)
    def _():
        for h in range(heads):
            lo = h * dim
            hi = lo + dim
            inv = pl.reciprocal(l_sc[h] + jnp.float32(1e-16), approx=True)
            o_ref[:, lo:hi] = jnp.maximum(acc_sc[:, lo:hi] * inv, 0.0
                                          ).astype(o_ref.dtype)   # F.relu fused


def pallas_edge_attention(x_src, alpha_src_t, alpha_dst, mask, heads, dim):
    ns_pad, hid = x_src.shape
    nd_pad = alpha_dst.shape[0]
    ts = _pick_tile(ns_pad, 128, _TS_CAP)
    td = _pick_tile(nd_pad, 32, _TD_CAP)
    # TODO(synk): block-sparse skip of empty src tiles via PrefetchScalarGridSpec (CSR block offsets).
    # TODO(synk): sweep pipeline_mode=pl.Buffered(3) on xs/mask if DMA-latency bound.

    kern = functools.partial(_edge_attn_kernel, heads, dim)
    return pl.pallas_call(
        kern,
        out_shape=jax.ShapeDtypeStruct((nd_pad, hid), jnp.bfloat16),
        grid=(nd_pad // td, ns_pad // ts),
        in_specs=[
            pl.BlockSpec((ts, hid), lambda di, si: (si, 0)),      # src features
            pl.BlockSpec((heads, ts), lambda di, si: (0, si)),    # alpha_src^T
            pl.BlockSpec((td, heads), lambda di, si: (di, 0)),    # alpha_dst
            pl.BlockSpec((td, ts), lambda di, si: (di, si)),      # int8 adjacency
        ],
        out_specs=pl.BlockSpec((td, hid), lambda di, si: (di, 0)),
        scratch_shapes=[
            pltpu.VMEM((heads, td, 1), jnp.float32),   # running max
            pltpu.VMEM((heads, td, 1), jnp.float32),   # running denom
            pltpu.VMEM((td, hid), jnp.float32),        # lane-dense accumulator
        ],
        compiler_params=pltpu.CompilerParams(
            dimension_semantics=("parallel", "arbitrary"),
            vmem_limit_bytes=_VMEM_LIMIT),
    )(x_src, alpha_src_t, alpha_dst, mask)


# ------------- kernels 3/4: tiled semantic attention + final Linear -----------

def _semantic_scores_kernel(num_rel, n_valid, *refs):
    # z_r:[bn,hid]bf16 ... kw:[hid,hid]bf16 kb:[1,hid]f32 -> o:[R,hid]f32 (sums)
    z_refs = refs[:num_rel]
    kw_ref, kb_ref = refs[num_rel], refs[num_rel + 1]
    o_ref = refs[num_rel + 2]
    i = pl.program_id(0)

    @pl.when(i == 0)
    def _():
        o_ref[...] = jnp.zeros_like(o_ref)

    bn = z_refs[0].shape[0]
    rows = jax.lax.broadcasted_iota(jnp.int32, (bn, 1), 0) + i * bn
    valid = (rows < n_valid).astype(jnp.float32)        # mask padded rows
    kw = kw_ref[...]
    kb = kb_ref[...]
    parts = []
    for r in range(num_rel):
        k_r = jnp.tanh(jnp.dot(z_refs[r][...], kw,
                               preferred_element_type=jnp.float32) + kb)
        parts.append(jnp.sum(k_r * valid, axis=0, keepdims=True))   # [1, hid]
    o_ref[...] += jnp.concatenate(parts, axis=0)


def pallas_semantic_scores(zs, k_w, k_b, n_valid):
    num_rel = len(zs)
    n_pad, hid = zs[0].shape
    bn = _pick_tile(n_pad, 128, 512)
    kern = functools.partial(_semantic_scores_kernel, num_rel, n_valid)
    z_spec = pl.BlockSpec((bn, hid), lambda i: (i, 0))
    return pl.pallas_call(
        kern,
        out_shape=jax.ShapeDtypeStruct((num_rel, hid), jnp.float32),
        grid=(n_pad // bn,),
        in_specs=[z_spec] * num_rel + [
            pl.BlockSpec((hid, hid), lambda i: (0, 0)),
            pl.BlockSpec((1, hid), lambda i: (0, 0)),
        ],
        out_specs=pl.BlockSpec((num_rel, hid), lambda i: (0, 0)),
        compiler_params=pltpu.CompilerParams(
            dimension_semantics=("arbitrary",),
            vmem_limit_bytes=_VMEM_LIMIT),
    )(*zs, k_w.astype(jnp.bfloat16), k_b.reshape(1, hid))


def _semantic_combine_kernel(num_rel, *refs):
    # z_r:[bn,hid]bf16 ... beta:SMEM[R]f32  lw:[hid,OP]bf16 lb:[1,OP]f32 -> o:[bn,OP]f32
    z_refs = refs[:num_rel]
    beta_ref = refs[num_rel]
    lw_ref, lb_ref = refs[num_rel + 1], refs[num_rel + 2]
    o_ref = refs[num_rel + 3]
    zw = beta_ref[0] * z_refs[0][...].astype(jnp.float32)
    for r in range(1, num_rel):
        zw = zw + beta_ref[r] * z_refs[r][...].astype(jnp.float32)
    o_ref[...] = jnp.dot(zw.astype(jnp.bfloat16), lw_ref[...],
                         preferred_element_type=jnp.float32) + lb_ref[...]


def pallas_semantic_combine(zs, beta, lin_w_pad, lin_b_pad):
    num_rel = len(zs)
    n_pad, hid = zs[0].shape
    out_pad = lin_w_pad.shape[1]
    bn = _pick_tile(n_pad, 128, 512)
    kern = functools.partial(_semantic_combine_kernel, num_rel)
    z_spec = pl.BlockSpec((bn, hid), lambda i: (i, 0))
    return pl.pallas_call(
        kern,
        out_shape=jax.ShapeDtypeStruct((n_pad, out_pad), jnp.float32),
        grid=(n_pad // bn,),
        in_specs=[z_spec] * num_rel + [
            pl.BlockSpec(memory_space=pltpu.MemorySpace.SMEM),       # beta scalars
            pl.BlockSpec((hid, out_pad), lambda i: (0, 0)),
            pl.BlockSpec((1, out_pad), lambda i: (0, 0)),
        ],
        out_specs=pl.BlockSpec((bn, out_pad), lambda i: (i, 0)),
        compiler_params=pltpu.CompilerParams(
            dimension_semantics=("parallel",),
            vmem_limit_bytes=_VMEM_LIMIT),
    )(*zs, beta, lin_w_pad.astype(jnp.bfloat16), lin_b_pad)


# ------------------------------ model (glue) ----------------------------------

def init_params(key, node_types, edge_types, in_ch, hid, out_ch, heads):
    dim = hid // heads
    keys = iter(jax.random.split(key, 8 + 4 * len(node_types) + 4 * len(edge_types)))
    nrm = lambda shp: 0.1 * jax.random.normal(next(keys), shp, jnp.float32)
    params = {
        "proj_w": {}, "proj_b": {},
        "att_src": {}, "att_dst": {},
        "k_w": nrm((hid, hid)), "k_b": nrm((hid,)), "q": nrm((1, hid)),
        "lin_w": nrm((hid, out_ch)), "lin_b": nrm((out_ch,)),
    }
    for nt in node_types:
        params["proj_w"][nt] = nrm((in_ch, hid))
        params["proj_b"][nt] = nrm((hid,))
    for et in edge_types:
        name = "__".join(et)
        params["att_src"][name] = nrm((heads, dim))
        params["att_dst"][name] = nrm((heads, dim))
    return params


def _build_att_matrices(params, node_types, edge_types, heads, dim, hid):
    """Block-structured att matrices so alpha halves fuse into the projection."""
    slots = {nt: [] for nt in node_types}
    for et in edge_types:
        src, _, dst = et
        name = "__".join(et)
        slots[src].append((name, "src"))
        slots[dst].append((name, "dst"))
    max_cols = max(len(s) for s in slots.values()) * heads
    k_pad = _round_up(max(max_cols, 1), 128)
    att_mats, col_of = {}, {}
    for nt in node_types:
        a = jnp.zeros((hid, k_pad), jnp.float32)
        for s, (name, side) in enumerate(slots[nt]):
            vec = params["att_src"][name] if side == "src" else params["att_dst"][name]
            for h in range(heads):
                a = a.at[h * dim:(h + 1) * dim, s * heads + h].set(vec[h])
            col_of[(name, side)] = s * heads
        att_mats[nt] = a
    return att_mats, col_of, k_pad


def han_model_forward(params, x_dict, masks, node_types, edge_types, heads, hid, out_ch):
    dim = hid // heads
    counts = {nt: x_dict[nt].shape[0] for nt in node_types}
    pad_rows = {nt: _round_up(counts[nt], _ROW_PAD) for nt in node_types}
    t_idx = {nt: i for i, nt in enumerate(node_types)}

    att_mats, col_of, k_pad = _build_att_matrices(
        params, node_types, edge_types, heads, dim, hid)

    # 1) batched per-type projection + fused alpha halves (bf16 MXU, f32 accum)
    h_all, a_all = pallas_type_projection(
        x_dict, params["proj_w"], params["proj_b"], att_mats, node_types, k_pad)
    h_pad = {nt: h_all[t_idx[nt], :pad_rows[nt], :] for nt in node_types}   # bf16 [Np,hid]
    alpha = {nt: a_all[t_idx[nt], :pad_rows[nt], :] for nt in node_types}   # f32  [Np,K]

    # 2) per-edge-type node-level attention (lane-dense features, online softmax)
    out_lists = {nt: [] for nt in node_types}
    for et in edge_types:
        src, _, dst = et
        name = "__".join(et)
        cs = col_of[(name, "src")]
        cd = col_of[(name, "dst")]
        asrc_t = alpha[src][:, cs:cs + heads].T                 # [H, Ns_pad] (tiny)
        adst = alpha[dst][:, cd:cd + heads]                     # [Nd_pad, H]
        mask_p = jnp.pad(masks[et].astype(jnp.int8),
                         ((0, pad_rows[dst] - counts[dst]),
                          (0, pad_rows[src] - counts[src])))
        out_lists[dst].append(
            pallas_edge_attention(h_pad[src], asrc_t, adst, mask_p, heads, dim))

    # 3) tiled two-pass semantic attention + final shared Linear (128-lane output)
    opad = _round_up(out_ch, 128)
    lin_w_pad = jnp.zeros((hid, opad), jnp.float32).at[:, :out_ch].set(params["lin_w"])
    lin_b_pad = jnp.zeros((1, opad), jnp.float32).at[0, :out_ch].set(params["lin_b"])
    out_dict = {}
    for nt in node_types:
        zs = out_lists[nt]
        if not zs:
            continue
        k_sums = pallas_semantic_scores(zs, params["k_w"], params["k_b"], counts[nt])
        k_mean = k_sums / jnp.float32(counts[nt])                     # [R, hid]
        score = jnp.sum(params["q"].reshape(1, hid) * k_mean, axis=-1)
        beta = jax.nn.softmax(score)                                  # tiny JAX step
        out_pad = pallas_semantic_combine(zs, beta, lin_w_pad, lin_b_pad)
        out_dict[nt] = out_pad[:counts[nt], :out_ch]
    return out_dict


# ------------------------------ pure-JAX reference ----------------------------

def ref_forward(params, x_dict, masks, node_types, edge_types, heads, hid):
    dim = hid // heads
    h_dict = {}
    for nt in node_types:
        h = x_dict[nt] @ params["proj_w"][nt] + params["proj_b"][nt]
        h_dict[nt] = h.reshape(-1, heads, dim).transpose(1, 0, 2)

    out_lists = {nt: [] for nt in node_types}
    for et in edge_types:
        src, _, dst = et
        name = "__".join(et)
        xs, xd = h_dict[src], h_dict[dst]
        a_s = params["att_src"][name].reshape(heads, 1, dim)
        a_d = params["att_dst"][name].reshape(heads, 1, dim)
        alpha_s = jnp.sum(xs * a_s, axis=-1)
        alpha_d = jnp.sum(xd * a_d, axis=-1)
        logits = alpha_d[:, :, None] + alpha_s[:, None, :]
        logits = jnp.where(logits > 0, logits, 0.2 * logits)
        edge = masks[et][None, :, :] > 0
        ml = jnp.where(edge, logits, -1e30)
        m = jnp.max(ml, axis=-1, keepdims=True)
        e = jnp.where(edge, jnp.exp(ml - m), 0.0)
        attn = e / (jnp.sum(e, axis=-1, keepdims=True) + 1e-16)
        o = jnp.einsum("hds,hsf->hdf", attn, xs)
        o = jnp.maximum(o, 0.0)
        out_lists[dst].append(o.transpose(1, 0, 2).reshape(xd.shape[1], hid))

    out_dict = {}
    for nt in node_types:
        z = jnp.stack(out_lists[nt], axis=0)
        k = jnp.tanh(z @ params["k_w"] + params["k_b"]).mean(axis=1)
        beta = jax.nn.softmax(jnp.sum(params["q"] * k, axis=-1), axis=0)
        out = jnp.sum(beta[:, None, None] * z, axis=0)
        out_dict[nt] = out @ params["lin_w"] + params["lin_b"]
    return out_dict


# ----------------------------------- main --------------------------------------

if __name__ == "__main__":
    node_types = ["author", "paper"]
    edge_types = [
        ("author", "writes", "paper"),
        ("paper", "written_by", "author"),
        ("paper", "cites", "paper"),
    ]
    num_nodes = {"author": 8, "paper": 16}
    in_ch, hid, out_ch, heads = 16, 32, 8, 4

    root = jax.random.PRNGKey(0)
    k_feat, k_edge, k_par = jax.random.split(root, 3)

    # node features
    x_dict = {}
    for i, nt in enumerate(node_types):
        x_dict[nt] = jax.random.normal(
            jax.random.fold_in(k_feat, i), (num_nodes[nt], in_ch), jnp.float32)

    # dense int8 adjacency masks [N_dst, N_src] per edge type (1 marks an edge)
    masks = {}
    for i, et in enumerate(edge_types):
        src, _, dst = et
        ke = jax.random.fold_in(k_edge, i)
        k1, k2 = jax.random.split(ke)
        n_edges = 3 * max(num_nodes[src], num_nodes[dst])
        s_idx = jax.random.randint(k1, (n_edges,), 0, num_nodes[src])
        d_idx = jax.random.randint(k2, (n_edges,), 0, num_nodes[dst])
        masks[et] = (jnp.zeros((num_nodes[dst], num_nodes[src]), jnp.int8)
                     .at[d_idx, s_idx].set(1))

    params = init_params(k_par, node_types, edge_types, in_ch, hid, out_ch, heads)

    out = han_model_forward(params, x_dict, masks, node_types, edge_types,
                            heads, hid, out_ch)
    out = jax.block_until_ready(out)

    ref = ref_forward(params, x_dict, masks, node_types, edge_types, heads, hid)

    for nt in node_types:
        assert out[nt].shape == (num_nodes[nt], out_ch), out[nt].shape
        assert bool(jnp.all(jnp.isfinite(out[nt])))
        assert bool(jnp.allclose(out[nt], ref[nt], rtol=3e-2, atol=3e-2)), (
            f"mismatch for node type {nt}: max abs diff "
            f"{float(jnp.max(jnp.abs(out[nt] - ref[nt])))}")

    print("KERNEL_OK")
</pallas_src>

<mosaic_0001>
module attributes {stable_mosaic.version = 11 : i64} {
  func.func @_proj_alpha_kernel(%arg0: i32, %arg1: i32, %arg2: memref<1x128x16xbf16, #tpu.memory_space<vmem>>, %arg3: memref<1x16x32xbf16, #tpu.memory_space<vmem>>, %arg4: memref<1x1x32xf32, #tpu.memory_space<vmem>>, %arg5: memref<1x32x128xbf16, #tpu.memory_space<vmem>>, %arg6: memref<1x128x32xbf16, #tpu.memory_space<vmem>>, %arg7: memref<1x128x128xf32, #tpu.memory_space<vmem>>) attributes {dimension_semantics = [#tpu.dimension_semantics<parallel>, #tpu.dimension_semantics<parallel>], iteration_bounds = array<i64: 2, 1>, scalar_prefetch = 0 : i64, scratch_operands = 0 : i64, tpu.core_type = #tpu.core_type<tc>, window_params = [{transform_indices = @transform_0, window_bounds = array<i64: 1, 128, 16>}, {transform_indices = @transform_1, window_bounds = array<i64: 1, 16, 32>}, {transform_indices = @transform_2, window_bounds = array<i64: 1, 1, 32>}, {transform_indices = @transform_3, window_bounds = array<i64: 1, 32, 128>}, {transform_indices = @transform_4, window_bounds = array<i64: 1, 128, 32>}, {transform_indices = @transform_5, window_bounds = array<i64: 1, 128, 128>}]} {
    %c0 = arith.constant 0 : index
    %c0_0 = arith.constant 0 : index
    %c0_1 = arith.constant 0 : index
    %0 = vector.load %arg2[%c0, %c0_0, %c0_1] : memref<1x128x16xbf16, #tpu.memory_space<vmem>>, vector<1x128x16xbf16>
    %1 = vector.shape_cast %0 : vector<1x128x16xbf16> to vector<128x16xbf16>
    %c0_2 = arith.constant 0 : index
    %c0_3 = arith.constant 0 : index
    %c0_4 = arith.constant 0 : index
    %2 = vector.load %arg3[%c0_2, %c0_3, %c0_4] : memref<1x16x32xbf16, #tpu.memory_space<vmem>>, vector<1x16x32xbf16>
    %3 = vector.shape_cast %2 : vector<1x16x32xbf16> to vector<16x32xbf16>
    %cst = arith.constant dense<0.000000e+00> : vector<128x32xf32>
    %4 = tpu.matmul %1, %3, %cst {dimension_numbers = #tpu.dot_dimension_numbers<[1], [0], [0], [1], [0, 0, 1, 1], [], []>} : vector<128x16xbf16>, vector<16x32xbf16>, vector<128x32xf32> -> vector<128x32xf32>
    %c0_5 = arith.constant 0 : index
    %c0_6 = arith.constant 0 : index
    %c0_7 = arith.constant 0 : index
    %5 = vector.load %arg4[%c0_5, %c0_6, %c0_7] : memref<1x1x32xf32, #tpu.memory_space<vmem>>, vector<1x1x32xf32>
    %6 = vector.shape_cast %5 : vector<1x1x32xf32> to vector<1x32xf32>
    %7 = vector.broadcast %6 : vector<1x32xf32> to vector<128x32xf32>
    %8 = arith.addf %4, %7 : vector<128x32xf32>
    %9 = arith.truncf %8 : vector<128x32xf32> to vector<128x32xbf16>
    %c0_8 = arith.constant 0 : index
    %c0_9 = arith.constant 0 : index
    %c0_10 = arith.constant 0 : index
    %10 = vector.load %arg6[%c0_8, %c0_9, %c0_10] : memref<1x128x32xbf16, #tpu.memory_space<vmem>>, vector<1x128x32xbf16>
    %11 = vector.shape_cast %10 : vector<1x128x32xbf16> to vector<128x32xbf16>
    %12 = vector.shape_cast %9 : vector<128x32xbf16> to vector<1x128x32xbf16>
    tpu.vector_store %arg6[%c0_8, %c0_9, %c0_10], %12 {strides = array<i32>} : memref<1x128x32xbf16, #tpu.memory_space<vmem>>, vector<1x128x32xbf16>,
    %13 = arith.truncf %8 : vector<128x32xf32> to vector<128x32xbf16>
    %c0_11 = arith.constant 0 : index
    %c0_12 = arith.constant 0 : index
    %c0_13 = arith.constant 0 : index
    %14 = vector.load %arg5[%c0_11, %c0_12, %c0_13] : memref<1x32x128xbf16, #tpu.memory_space<vmem>>, vector<1x32x128xbf16>
    %15 = vector.shape_cast %14 : vector<1x32x128xbf16> to vector<32x128xbf16>
    %cst_14 = arith.constant dense<0.000000e+00> : vector<128x128xf32>
    %16 = tpu.matmul %13, %15, %cst_14 {dimension_numbers = #tpu.dot_dimension_numbers<[1], [0], [0], [1], [0, 0, 1, 1], [], []>} : vector<128x32xbf16>, vector<32x128xbf16>, vector<128x128xf32> -> vector<128x128xf32>
    %c0_15 = arith.constant 0 : index
    %c0_16 = arith.constant 0 : index
    %c0_17 = arith.constant 0 : index
    %17 = vector.load %arg7[%c0_15, %c0_16, %c0_17] : memref<1x128x128xf32, #tpu.memory_space<vmem>>, vector<1x128x128xf32>
    %18 = vector.shape_cast %17 : vector<1x128x128xf32> to vector<128x128xf32>
    %19 = vector.shape_cast %16 : vector<128x128xf32> to vector<1x128x128xf32>
    tpu.vector_store %arg7[%c0_15, %c0_16, %c0_17], %19 {strides = array<i32>} : memref<1x128x128xf32, #tpu.memory_space<vmem>>, vector<1x128x128xf32>,
    return
  }
  func.func @transform_0(%arg0: i32, %arg1: i32) -> (i32, i32, i32) {
    %c0_i32 = arith.constant 0 : i32
    %c0_i32_0 = arith.constant 0 : i32
    return %arg0, %arg1, %c0_i32 : i32, i32, i32
  }
  func.func @transform_1(%arg0: i32, %arg1: i32) -> (i32, i32, i32) {
    %c0_i32 = arith.constant 0 : i32
    %c0_i32_0 = arith.constant 0 : i32
    %c0_i32_1 = arith.constant 0 : i32
    return %arg0, %c0_i32, %c0_i32_0 : i32, i32, i32
  }
  func.func @transform_2(%arg0: i32, %arg1: i32) -> (i32, i32, i32) {
    %c0_i32 = arith.constant 0 : i32
    %c0_i32_0 = arith.constant 0 : i32
    %c0_i32_1 = arith.constant 0 : i32
    return %arg0, %c0_i32, %c0_i32_0 : i32, i32, i32
  }
  func.func @transform_3(%arg0: i32, %arg1: i32) -> (i32, i32, i32) {
    %c0_i32 = arith.constant 0 : i32
    %c0_i32_0 = arith.constant 0 : i32
    %c0_i32_1 = arith.constant 0 : i32
    return %arg0, %c0_i32, %c0_i32_0 : i32, i32, i32
  }
  func.func @transform_4(%arg0: i32, %arg1: i32) -> (i32, i32, i32) {
    %c0_i32 = arith.constant 0 : i32
    %c0_i32_0 = arith.constant 0 : i32
    return %arg0, %arg1, %c0_i32 : i32, i32, i32
  }
  func.func @transform_5(%arg0: i32, %arg1: i32) -> (i32, i32, i32) {
    %c0_i32 = arith.constant 0 : i32
    %c0_i32_0 = arith.constant 0 : i32
    return %arg0, %arg1, %c0_i32 : i32, i32, i32
  }
}

</mosaic_0001>

<llo_original>
// kernel: tpu_custom_call.1
$region0: #{tpu_custom_call.1}
  #allocation0 [shape = 'u32[]', space=smem, size = 0x4, offset = 0x4, fixed_abs, tag = 'smem constant byte address 0x4 - core index']
  #allocation1 [shape = 'u32[72,128]{1,0:T(1,128)}', space=vmem, size = 0x9000, scoped, tag = 'internal scratch']
  %s0 = inlined_call_operand.vmem [shape: bf16[2,128,16], index: 0, kind: input, shape index: {}]
  %s1 = inlined_call_operand.vmem [shape: bf16[2,16,32], index: 1, kind: input, shape index: {}]
  %s2 = inlined_call_operand.vmem [shape: f32[2,1,32], index: 2, kind: input, shape index: {}]
  %s3 = inlined_call_operand.vmem [shape: bf16[2,32,128], index: 3, kind: input, shape index: {}]
  %s4 = inlined_call_operand.vmem [shape: bf16[2,128,32], index: 4, kind: output, shape index: {0}]
  %s5 = inlined_call_operand.hbm [shape: f32[2,128,128], index: 5, kind: output, shape index: {1}]
  %6 = xla_tuple %s4, %s5
  %s7 = sld [smem:[#allocation0]]
  $region57: #{tpu_custom_call.1} parent=0
    _
  %s9 = ssub.s32 1, %s7
  %s10 = scalar_select 0, %s9, %s7
  $region1: #{tpu_custom_call.1} parent=0
    #allocation2 [shape = 'u8[131072]{0}', space=vmem, size = 0x20000, scoped, tag = 'output window, operand 1']
    #allocation3 [shape = 's32[2]{0}', space=sflag, size = 0x8, scoped, tag = 'scoped memory for tpu_custom_call.1']
    %11 = vsyncpa [#allocation3], 0
    %s12 = scalar_lea.sflag [#allocation3], 1
    %13 = vsyncpa %s12, 0
    loop: start=0, step=1, limit=4
    $region2: #{tpu_custom_call.1} parent=1 // loop_pre_header
      _
    $region3: #{tpu_custom_call.1} parent=1 // loop_header
      %s15 = sphi 0, %s19
      %p16 = scmp.ge.s32.totalorder %s15, 4
      %s22 = sphi 0, %s34
      %s23 = sphi 0, %s30
      %s24 = sphi 0, %s22
      %s25 = sphi 0, %s23
      %s26 = sphi 0, %s24
      %s27 = sphi 0, %s25
      %s39 = sphi 0, %s41
      %s42 = sphi 0, %s39
      %s43 = sphi 0, %s42
      %s59 = sphi 0, %s43
      %s65 = sphi 0, %s67
      %s68 = sphi 0, %s65
      %s69 = sphi 0, %s68
      %s85 = sphi 0, %s69
      %s91 = sphi 0, %s93
      %s94 = sphi 0, %s91
      %s95 = sphi 0, %s94
      %s111 = sphi 0, %s95
      %s117 = sphi 0, %s119
      %s120 = sphi 0, %s117
      %s121 = sphi 0, %s120
      %s137 = sphi 0, %s121
      %s145 = sphi 0, %s147
      %s148 = sphi 0, %s145
      %s149 = sphi 0, %s148
      %s165 = sphi 0, %s149
      %s173 = sphi 0, %s175
      %s176 = sphi 0, %s173
      %s177 = sphi 0, %s176
      %s193 = sphi 0, %s177
    $region4: #{tpu_custom_call.1} parent=1 // loop_header_branch
      %18 = sbr.rel (%p16) target = $region8
    $region5: #{tpu_custom_call.1} parent=1 // loop_body
      %s20 = ssub.s32 %s15, 1
      %s21 = ssub.s32 %s15, 2
      %s28 = sadd.s32 1, %s23
      %p29 = scmp.ge.s32.totalorder %s28, 1
      %s30 = scalar_select %p29, 0, %s28
      %s31 = sadd.s32 1, %s22
      %s32 = scalar_select %p29, %s31, %s22
      %p33 = scmp.ge.s32.totalorder %s32, 2
      %s34 = scalar_select %p33, 0, %s32
      %s35 = ssub.s32 %s22, %s34
      %s36 = ssub.s32 %s23, %s30
      %s37 = sor.u32 %s35, %s36
      %p38 = scmp.eq.s32.totalorder %s37, 0
      %s40 = sadd.s32 %s39, 1
      %s41 = scalar_select %p38, %s39, %s40
      %p44 = pneg %p38
      %p45 = scmp.eq.s32.totalorder %s15, 1
      %p46 = por %p44, %p45
      %p47 = scmp.ne.s32.totalorder %s39, %s42
      %p48 = scmp.eq.s32.totalorder %s15, 0
      %p49 = por %p47, %p48
      %p50 = scmp.ne.s32.totalorder %s39, %s42
      %p51 = scmp.eq.s32.totalorder %s20, 1
      %p52 = por %p50, %p51
      %p53 = scmp.ne.s32.totalorder %s42, %s43
      %p54 = scmp.eq.s32.totalorder %s20, 0
      %p55 = por %p53, %p54
      %p56 = scmp.ne.s32.totalorder %s42, %s43
      %p57 = scmp.eq.s32.totalorder %s21, 1
      %p58 = por %p56, %p57
      %p60 = scmp.ne.s32.totalorder %s43, %s59
      %p61 = scmp.eq.s32.totalorder %s21, 0
      %p62 = por %p60, %p61
      %s63 = ssub.s32 %s22, %s34
      %p64 = scmp.eq.s32.totalorder %s63, 0
      %s66 = sadd.s32 %s65, 1
      %s67 = scalar_select %p64, %s65, %s66
      %p70 = pneg %p64
      %p71 = scmp.eq.s32.totalorder %s15, 1
      %p72 = por %p70, %p71
      %p73 = scmp.ne.s32.totalorder %s65, %s68
      %p74 = scmp.eq.s32.totalorder %s15, 0
      %p75 = por %p73, %p74
      %p76 = scmp.ne.s32.totalorder %s65, %s68
      %p77 = scmp.eq.s32.totalorder %s20, 1
      %p78 = por %p76, %p77
      %p79 = scmp.ne.s32.totalorder %s68, %s69
      %p80 = scmp.eq.s32.totalorder %s20, 0
      %p81 = por %p79, %p80
      %p82 = scmp.ne.s32.totalorder %s68, %s69
      %p83 = scmp.eq.s32.totalorder %s21, 1
      %p84 = por %p82, %p83
      %p86 = scmp.ne.s32.totalorder %s69, %s85
      %p87 = scmp.eq.s32.totalorder %s21, 0
      %p88 = por %p86, %p87
      %s89 = ssub.s32 %s22, %s34
      %p90 = scmp.eq.s32.totalorder %s89, 0
      %s92 = sadd.s32 %s91, 1
      %s93 = scalar_select %p90, %s91, %s92
      %p96 = pneg %p90
      %p97 = scmp.eq.s32.totalorder %s15, 1
      %p98 = por %p96, %p97
      %p99 = scmp.ne.s32.totalorder %s91, %s94
      %p100 = scmp.eq.s32.totalorder %s15, 0
      %p101 = por %p99, %p100
      %p102 = scmp.ne.s32.totalorder %s91, %s94
      %p103 = scmp.eq.s32.totalorder %s20, 1
      %p104 = por %p102, %p103
      %p105 = scmp.ne.s32.totalorder %s94, %s95
      %p106 = scmp.eq.s32.totalorder %s20, 0
      %p107 = por %p105, %p106
      %p108 = scmp.ne.s32.totalorder %s94, %s95
      %p109 = scmp.eq.s32.totalorder %s21, 1
      %p110 = por %p108, %p109
      %p112 = scmp.ne.s32.totalorder %s95, %s111
      %p113 = scmp.eq.s32.totalorder %s21, 0
      %p114 = por %p112, %p113
      %s115 = ssub.s32 %s22, %s34
      %p116 = scmp.eq.s32.totalorder %s115, 0
      %s118 = sadd.s32 %s117, 1
      %s119 = scalar_select %p116, %s117, %s118
      %p122 = pneg %p116
      %p123 = scmp.eq.s32.totalorder %s15, 1
      %p124 = por %p122, %p123
      %p125 = scmp.ne.s32.totalorder %s117, %s120
      %p126 = scmp.eq.s32.totalorder %s15, 0
      %p127 = por %p125, %p126
      %p128 = scmp.ne.s32.totalorder %s117, %s120
      %p129 = scmp.eq.s32.totalorder %s20, 1
      %p130 = por %p128, %p129
      %p131 = scmp.ne.s32.totalorder %s120, %s121
      %p132 = scmp.eq.s32.totalorder %s20, 0
      %p133 = por %p131, %p132
      %p134 = scmp.ne.s32.totalorder %s120, %s121
      %p135 = scmp.eq.s32.totalorder %s21, 1
      %p136 = por %p134, %p135
      %p138 = scmp.ne.s32.totalorder %s121, %s137
      %p139 = scmp.eq.s32.totalorder %s21, 0
      %p140 = por %p138, %p139
      %s141 = ssub.s32 %s22, %s34
      %s142 = ssub.s32 %s23, %s30
      %s143 = sor.u32 %s141, %s142
      %p144 = scmp.eq.s32.totalorder %s143, 0
      %s146 = sadd.s32 %s145, 1
      %s147 = scalar_select %p144, %s145, %s146
      %p150 = pneg %p144
      %p151 = scmp.eq.s32.totalorder %s15, 1
      %p152 = por %p150, %p151
      %p153 = scmp.ne.s32.totalorder %s145, %s148
      %p154 = scmp.eq.s32.totalorder %s15, 0
      %p155 = por %p153, %p154
      %p156 = scmp.ne.s32.totalorder %s145, %s148
      %p157 = scmp.eq.s32.totalorder %s20, 1
      %p158 = por %p156, %p157
      %p159 = scmp.ne.s32.totalorder %s148, %s149
      %p160 = scmp.eq.s32.totalorder %s20, 0
      %p161 = por %p159, %p160
      %p162 = scmp.ne.s32.totalorder %s148, %s149
      %p163 = scmp.eq.s32.totalorder %s21, 1
      %p164 = por %p162, %p163
      %p166 = scmp.ne.s32.totalorder %s149, %s165
      %p167 = scmp.eq.s32.totalorder %s21, 0
      %p168 = por %p166, %p167
      %s169 = ssub.s32 %s22, %s34
      %s170 = ssub.s32 %s23, %s30
      %s171 = sor.u32 %s169, %s170
      %p172 = scmp.eq.s32.totalorder %s171, 0
      %s174 = sadd.s32 %s173, 1
      %s175 = scalar_select %p172, %s173, %s174
      %p178 = pneg %p172
      %p179 = scmp.eq.s32.totalorder %s15, 1
      %p180 = por %p178, %p179
      %p181 = scmp.ne.s32.totalorder %s173, %s176
      %p182 = scmp.eq.s32.totalorder %s15, 0
      %p183 = por %p181, %p182
      %p184 = scmp.ne.s32.totalorder %s173, %s176
      %p185 = scmp.eq.s32.totalorder %s20, 1
      %p186 = por %p184, %p185
      %p187 = scmp.ne.s32.totalorder %s176, %s177
      %p188 = scmp.eq.s32.totalorder %s20, 0
      %p189 = por %p187, %p188
      %p190 = scmp.ne.s32.totalorder %s176, %s177
      %p191 = scmp.eq.s32.totalorder %s21, 1
      %p192 = por %p190, %p191
      %p194 = scmp.ne.s32.totalorder %s177, %s193
      %p195 = scmp.eq.s32.totalorder %s21, 0
      %p196 = por %p194, %p195
      %p197 = scmp.le.s32.totalorder 1, %s15
      %p198 = scmp.lt.s32.totalorder %s15, 3
      %p199 = pnand %p197, %p198
      %p200 = pneg %p199
      // Predicated region
      $region9: #{tpu_custom_call.1} parent=5 // pred_check
        _
      $region10: #{tpu_custom_call.1} parent=5 // pred_check_branch
        %202 = sbr.rel (%p199) target = $region12
      $region11: #{tpu_custom_call.1} parent=5 // pred_region
        %s203 = ssub.s32 %s15, 1
      $region12: #{tpu_custom_call.1} parent=5 // pred_fallthru
        _
      %p204 = scmp.lt.s32.totalorder %s15, 2
      // Predicated region
      $region13: #{tpu_custom_call.1} parent=5 // pred_check
        %p205 = pneg %p204
      $region14: #{tpu_custom_call.1} parent=5 // pred_check_branch
        %207 = sbr.rel (%p205) target = $region16
      $region15: #{tpu_custom_call.1} parent=5 // pred_region
        // Predicated region
        $region17: #{tpu_custom_call.1} parent=15 // pred_check
          %p208 = pneg %p49
        $region18: #{tpu_custom_call.1} parent=15 // pred_check_branch
          %210 = sbr.rel (%p208) target = $region20
        $region19: #{tpu_custom_call.1} parent=15 // pred_region
          %s211 = smul.u32 16, %s23
          %p212 = scmp.lt.s32.totalorder %s22, 1
          %s213 = scalar_select %p212, %s22, 1
          %p214 = scmp.lt.s32.totalorder %s211, 15
          %s215 = scalar_select %p214, %s211, 15
          %s216 = smul.addr %s213, 16
          %s217 = sadd.s32 %s215, %s216
          %s218 = smul.addr %s217, 4
          %s219 = scalar_lea.vmem %s0, %s218
          %s220 = smul.u32 16, %s23
        $region20: #{tpu_custom_call.1} parent=15 // pred_fallthru
          _
        // Predicated region
        $region21: #{tpu_custom_call.1} parent=15 // pred_check
          %p221 = pneg %p75
        $region22: #{tpu_custom_call.1} parent=15 // pred_check_branch
          %223 = sbr.rel (%p221) target = $region24
        $region23: #{tpu_custom_call.1} parent=15 // pred_region
          %p224 = scmp.lt.s32.totalorder %s22, 1
          %s225 = scalar_select %p224, %s22, 1
          %s226 = smul.addr %s225, 2
          %s227 = smul.addr %s226, 4
          %s228 = scalar_lea.vmem %s1, %s227
        $region24: #{tpu_custom_call.1} parent=15 // pred_fallthru
          _
        // Predicated region
        $region25: #{tpu_custom_call.1} parent=15 // pred_check
          %p229 = pneg %p101
        $region26: #{tpu_custom_call.1} parent=15 // pred_check_branch
          %231 = sbr.rel (%p229) target = $region28
        $region27: #{tpu_custom_call.1} parent=15 // pred_region
          %p232 = scmp.lt.s32.totalorder %s22, 1
          %s233 = scalar_select %p232, %s22, 1
          %s234 = scalar_lea.vmem %s2, %s233
        $region28: #{tpu_custom_call.1} parent=15 // pred_fallthru
          _
        // Predicated region
        $region29: #{tpu_custom_call.1} parent=15 // pred_check
          %p235 = pneg %p127
        $region30: #{tpu_custom_call.1} parent=15 // pred_check_branch
          %237 = sbr.rel (%p235) target = $region32
        $region31: #{tpu_custom_call.1} parent=15 // pred_region
          %p238 = scmp.lt.s32.totalorder %s22, 1
          %s239 = scalar_select %p238, %s22, 1
          %s240 = smul.addr %s239, 4
          %s241 = smul.addr %s240, 4
          %s242 = scalar_lea.vmem %s3, %s241
        $region32: #{tpu_custom_call.1} parent=15 // pred_fallthru
          _
      $region16: #{tpu_custom_call.1} parent=5 // pred_fallthru
        _
      %p243 = scmp.le.s32.totalorder 1, %s15
      %p244 = scmp.lt.s32.totalorder %s15, 3
      %p245 = pnand %p243, %p244
      %p246 = pneg %p245
      // Predicated region
      $region33: #{tpu_custom_call.1} parent=5 // pred_check
        _
      $region34: #{tpu_custom_call.1} parent=5 // pred_check_branch
        %248 = sbr.rel (%p245) target = $region36
      $region35: #{tpu_custom_call.1} parent=5 // pred_region
        %s249 = ssub.s32 %s15, 1
        %s250 = smul.u32 16, %s25
        %p251 = scmp.lt.s32.totalorder %s24, 1
        %s252 = scalar_select %p251, %s24, 1
        %p253 = scmp.lt.s32.totalorder %s250, 15
        %s254 = scalar_select %p253, %s250, 15
        %s255 = smul.addr %s252, 16
        %s256 = sadd.s32 %s254, %s255
        %s257 = smul.addr %s256, 4
        %s258 = scalar_lea.vmem %s0, %s257
        %p259 = pneg %p55
        %p260 = pneg %p52
        %p261 = scmp.lt.s32.totalorder %s24, 1
        %s262 = scalar_select %p261, %s24, 1
        %s263 = smul.addr %s262, 2
        %s264 = smul.addr %s263, 4
        %s265 = scalar_lea.vmem %s1, %s264
        %p266 = pneg %p81
        %p267 = pneg %p78
        %p268 = scmp.lt.s32.totalorder %s24, 1
        %s269 = scalar_select %p268, %s24, 1
        %s270 = scalar_lea.vmem %s2, %s269
        %p271 = pneg %p107
        %p272 = pneg %p104
        %p273 = scmp.lt.s32.totalorder %s24, 1
        %s274 = scalar_select %p273, %s24, 1
        %s275 = smul.addr %s274, 4
        %s276 = smul.addr %s275, 4
        %s277 = scalar_lea.vmem %s3, %s276
        %p278 = pneg %p133
        %p279 = pneg %p130
        %p280 = pneg %p161
        %p281 = pneg %p158
        %s282 = smul.u32 16, %s25
        %p283 = scmp.lt.s32.totalorder %s24, 1
        %s284 = scalar_select %p283, %s24, 1
        %p285 = scmp.lt.s32.totalorder %s282, 15
        %s286 = scalar_select %p285, %s282, 15
        %s287 = smul.addr %s284, 16
        %s288 = sadd.s32 %s286, %s287
        %s289 = smul.addr %s288, 4
        %s290 = scalar_lea.vmem %s4, %s289
        %p291 = pneg %p189
        %p292 = pneg %p186
        %s293 = sand.u32 %s176, 1
        %s294 = scalar_lea.sflag [#allocation3], %s293
        %s295 = sand.u32 %s176, 1
        %s296 = smul.addr %s295, 128
        %s297 = scalar_lea.vmem [#allocation2], %s296
        %s298 = smul.u32 16, %s25
        %p299 = scmp.lt.s32.totalorder %s24, 1
        %s300 = scalar_select %p299, %s24, 1
        %p301 = scmp.lt.s32.totalorder %s298, 15
        %s302 = scalar_select %p301, %s298, 15
        %s303 = smul.addr %s300, 16
        %s304 = sadd.s32 %s302, %s303
        %s305 = smul.addr %s304, 4
        %s306 = scalar_lea.vmem %s0, %s305
        %s307 = smul.u32 16, %s25
        %p308 = scmp.lt.s32.totalorder %s24, 1
        %s309 = scalar_select %p308, %s24, 1
        %s310 = smul.addr %s309, 2
        %s311 = smul.addr %s310, 4
        %s312 = scalar_lea.vmem %s1, %s311
        %p313 = scmp.lt.s32.totalorder %s24, 1
        %s314 = scalar_select %p313, %s24, 1
        %s315 = scalar_lea.vmem %s2, %s314
        %p316 = scmp.lt.s32.totalorder %s24, 1
        %s317 = scalar_select %p316, %s24, 1
        %s318 = smul.addr %s317, 4
        %s319 = smul.addr %s318, 4
        %s320 = scalar_lea.vmem %s3, %s319
        %s321 = smul.u32 16, %s25
        %p322 = scmp.lt.s32.totalorder %s24, 1
        %s323 = scalar_select %p322, %s24, 1
        %p324 = scmp.lt.s32.totalorder %s321, 15
        %s325 = scalar_select %p324, %s321, 15
        %s326 = smul.addr %s323, 16
        %s327 = sadd.s32 %s325, %s326
        %s328 = smul.addr %s327, 4
        %s329 = scalar_lea.vmem %s4, %s328
        %s330 = smul.u32 16, %s25
        %s331 = smul.u32 16, %s25
        %v333 = vld [vmem:[%s306] sm:$0xf]
        %v334 = vld [vmem:[%s306 + $0x4] sm:$0xf]
        %v335 = vld [vmem:[%s306 + $0x8] sm:$0xf]
        %v336 = vld [vmem:[%s306 + $0xc] sm:$0xf]
        %v337 = vld [vmem:[%s306 + $0x10] sm:$0xf]
        %v338 = vld [vmem:[%s306 + $0x14] sm:$0xf]
        %v339 = vld [vmem:[%s306 + $0x18] sm:$0xf]
        %v340 = vld [vmem:[%s306 + $0x1c] sm:$0xf]
        %v341 = vld [vmem:[%s306 + $0x20] sm:$0xf]
        %v342 = vld [vmem:[%s306 + $0x24] sm:$0xf]
        %v343 = vld [vmem:[%s306 + $0x28] sm:$0xf]
        %v344 = vld [vmem:[%s306 + $0x2c] sm:$0xf]
        %v345 = vld [vmem:[%s306 + $0x30] sm:$0xf]
        %v346 = vld [vmem:[%s306 + $0x34] sm:$0xf]
        %v347 = vld [vmem:[%s306 + $0x38] sm:$0xf]
        %v348 = vld [vmem:[%s306 + $0x3c] sm:$0xf]
        %v349 = vld [vmem:[%s312] sm:$0xf]
        %v350 = vld [vmem:[%s312 + $0x4] sm:$0xf]
        %v351 = vld [vmem:[%s315] sm:$0x1]
        %v353 = vperm.slane %v351, 0
        %v371 = vunpack.c.l.b16 %v333
        %v372 = vunpack.c.l.b16 %v334
        %v373 = vunpack.c.l.b16 %v335
        %v374 = vunpack.c.l.b16 %v336
        %v375 = vunpack.c.l.b16 %v337
        %v376 = vunpack.c.l.b16 %v338
        %v377 = vunpack.c.l.b16 %v339
        %v378 = vunpack.c.l.b16 %v340
        %v379 = vunpack.c.l.b16 %v341
        %v380 = vunpack.c.l.b16 %v342
        %v381 = vunpack.c.l.b16 %v343
        %v382 = vunpack.c.l.b16 %v344
        %v383 = vunpack.c.l.b16 %v345
        %v384 = vunpack.c.l.b16 %v346
        %v385 = vunpack.c.l.b16 %v347
        %v386 = vunpack.c.l.b16 %v348
        %v387 = vpack.c.b16 %v372, %v371
        %v388 = vpack.c.b16 %v374, %v373
        %v389 = vpack.c.b16 %v376, %v375
        %v390 = vpack.c.b16 %v378, %v377
        %v391 = vpack.c.b16 %v380, %v379
        %v392 = vpack.c.b16 %v382, %v381
        %v393 = vpack.c.b16 %v384, %v383
        %v394 = vpack.c.b16 %v386, %v385
        %v397 = vunpack.c.l.b16 %v349
        %v398 = vunpack.c.l.b16 %v350
        %v399 = vpack.c.b16 %v398, %v397
        %vm401 = vcmask 130048
        %v403 = vsel %vm401, %v387, 0
        %v406 = vsel %vm401, %v388, 0
        %v409 = vsel %vm401, %v389, 0
        %v412 = vsel %vm401, %v390, 0
        %v415 = vsel %vm401, %v391, 0
        %v418 = vsel %vm401, %v392, 0
        %v421 = vsel %vm401, %v393, 0
        %v424 = vsel %vm401, %v394, 0
        %426 = vmatpush.bf16.msra.mxu0 0
        %427 = vmatpush.bf16.msra.mxu0 0
        %428 = vmatpush.bf16.msra.mxu0 0
        %429 = vmatpush.bf16.msra.mxu0 0
        %430 = vmatpush.bf16.msra.mxu0 0
        %431 = vmatpush.bf16.msra.mxu0 0
        %432 = vmatpush.bf16.msra.mxu0 0
        %433 = vmatpush.bf16.msra.mxu0 %v399
        %434 = vmatmul.bf16.gmra.mxu0 %v403
        %v435 = vpop.f32.mrf.mxu0
        %v436 = vadd.f32 %v353, %v435
        %v437 = vpop.f32.mrf.mxu0
        %v438 = vadd.f32 %v353, %v437
        %439 = vmatmul.bf16.gmra.mxu0 %v406
        %v440 = vpop.f32.mrf.mxu0
        %v441 = vadd.f32 %v353, %v440
        %v442 = vpop.f32.mrf.mxu0
        %v443 = vadd.f32 %v353, %v442
        %444 = vmatmul.bf16.gmra.mxu0 %v409
        %v445 = vpop.f32.mrf.mxu0
        %v446 = vadd.f32 %v353, %v445
        %v447 = vpop.f32.mrf.mxu0
        %v448 = vadd.f32 %v353, %v447
        %449 = vmatmul.bf16.gmra.mxu0 %v412
        %v450 = vpop.f32.mrf.mxu0
        %v451 = vadd.f32 %v353, %v450
        %v452 = vpop.f32.mrf.mxu0
        %v453 = vadd.f32 %v353, %v452
        %454 = vmatmul.bf16.gmra.mxu0 %v415
        %v455 = vpop.f32.mrf.mxu0
        %v456 = vadd.f32 %v353, %v455
        %v457 = vpop.f32.mrf.mxu0
        %v458 = vadd.f32 %v353, %v457
        %459 = vmatmul.bf16.gmra.mxu0 %v418
        %v460 = vpop.f32.mrf.mxu0
        %v461 = vadd.f32 %v353, %v460
        %v462 = vpop.f32.mrf.mxu0
        %v463 = vadd.f32 %v353, %v462
        %464 = vmatmul.bf16.gmra.mxu0 %v421
        %v465 = vpop.f32.mrf.mxu0
        %v466 = vadd.f32 %v353, %v465
        %v467 = vpop.f32.mrf.mxu0
        %v468 = vadd.f32 %v353, %v467
        %469 = vmatmul.bf16.gmra.mxu0 %v424
        %v470 = vpop.f32.mrf.mxu0
        %v471 = vadd.f32 %v353, %v470
        %v472 = vpop.f32.mrf.mxu0
        %v473 = vadd.f32 %v353, %v472
        %474 = vdwg.mxu0
        %v475 = vpack.c.bf16 %v436, %v436
        %v476 = vpack.c.bf16 %v438, %v438
        %v477 = vpack.c.bf16 %v441, %v441
        %v478 = vpack.c.bf16 %v443, %v443
        %v479 = vpack.c.bf16 %v446, %v446
        %v480 = vpack.c.bf16 %v448, %v448
        %v481 = vpack.c.bf16 %v451, %v451
        %v482 = vpack.c.bf16 %v453, %v453
        %v483 = vpack.c.bf16 %v456, %v456
        %v484 = vpack.c.bf16 %v458, %v458
        %v485 = vpack.c.bf16 %v461, %v461
        %v486 = vpack.c.bf16 %v463, %v463
        %v487 = vpack.c.bf16 %v466, %v466
        %v488 = vpack.c.bf16 %v468, %v468
        %v489 = vpack.c.bf16 %v471, %v471
        %v490 = vpack.c.bf16 %v473, %v473
        %vm491 = vcmask 257024
        %492 = vst.msk [vmem:[%s329] sm:$0xf] %vm491, %v475
        %493 = vst.msk [vmem:[%s329 + $0x4] sm:$0xf] %vm491, %v476
        %494 = vst.msk [vmem:[%s329 + $0x8] sm:$0xf] %vm491, %v477
        %495 = vst.msk [vmem:[%s329 + $0xc] sm:$0xf] %vm491, %v478
        %496 = vst.msk [vmem:[%s329 + $0x10] sm:$0xf] %vm491, %v479
        %497 = vst.msk [vmem:[%s329 + $0x14] sm:$0xf] %vm491, %v480
        %498 = vst.msk [vmem:[%s329 + $0x18] sm:$0xf] %vm491, %v481
        %499 = vst.msk [vmem:[%s329 + $0x1c] sm:$0xf] %vm491, %v482
        %500 = vst.msk [vmem:[%s329 + $0x20] sm:$0xf] %vm491, %v483
        %501 = vst.msk [vmem:[%s329 + $0x24] sm:$0xf] %vm491, %v484
        %502 = vst.msk [vmem:[%s329 + $0x28] sm:$0xf] %vm491, %v485
        %503 = vst.msk [vmem:[%s329 + $0x2c] sm:$0xf] %vm491, %v486
        %504 = vst.msk [vmem:[%s329 + $0x30] sm:$0xf] %vm491, %v487
        %505 = vst.msk [vmem:[%s329 + $0x34] sm:$0xf] %vm491, %v488
        %506 = vst.msk [vmem:[%s329 + $0x38] sm:$0xf] %vm491, %v489
        %507 = vst.msk [vmem:[%s329 + $0x3c] sm:$0xf] %vm491, %v490
        %v508 = vld [vmem:[%s320] sm:$0xf]
        %v509 = vld [vmem:[%s320 + $0x4] sm:$0xf]
        %v510 = vld [vmem:[%s320 + $0x8] sm:$0xf]
        %v511 = vld [vmem:[%s320 + $0xc] sm:$0xf]
        %v528 = vunpack.c.l.b16 %v475
        %v529 = vunpack.c.l.b16 %v476
        %v530 = vunpack.c.l.b16 %v477
        %v531 = vunpack.c.l.b16 %v478
        %v532 = vunpack.c.l.b16 %v479
        %v533 = vunpack.c.l.b16 %v480
        %v534 = vunpack.c.l.b16 %v481
        %v535 = vunpack.c.l.b16 %v482
        %v536 = vunpack.c.l.b16 %v483
        %v537 = vunpack.c.l.b16 %v484
        %v538 = vunpack.c.l.b16 %v485
        %v539 = vunpack.c.l.b16 %v486
        %v540 = vunpack.c.l.b16 %v487
        %v541 = vunpack.c.l.b16 %v488
        %v542 = vunpack.c.l.b16 %v489
        %v543 = vunpack.c.l.b16 %v490
        %v544 = vpack.c.b16 %v529, %v528
        %v545 = vpack.c.b16 %v531, %v530
        %v546 = vpack.c.b16 %v533, %v532
        %v547 = vpack.c.b16 %v535, %v534
        %v548 = vpack.c.b16 %v537, %v536
        %v549 = vpack.c.b16 %v539, %v538
        %v550 = vpack.c.b16 %v541, %v540
        %v551 = vpack.c.b16 %v543, %v542
        %v556 = vunpack.c.l.b16 %v508
        %v557 = vunpack.c.l.b16 %v509
        %v558 = vunpack.c.l.b16 %v510
        %v559 = vunpack.c.l.b16 %v511
        %v560 = vpack.c.b16 %v557, %v556
        %v561 = vpack.c.b16 %v559, %v558
        %vm564 = vcmask 261120
        %v566 = vsel %vm564, %v544, 0
        %v569 = vsel %vm564, %v545, 0
        %v572 = vsel %vm564, %v546, 0
        %v575 = vsel %vm564, %v547, 0
        %v578 = vsel %vm564, %v548, 0
        %v581 = vsel %vm564, %v549, 0
        %v584 = vsel %vm564, %v550, 0
        %v587 = vsel %vm564, %v551, 0
        %589 = vmatpush.bf16.msra.mxu0 0
        %590 = vmatpush.bf16.msra.mxu0 0
        %591 = vmatpush.bf16.msra.mxu0 0
        %592 = vmatpush.bf16.msra.mxu0 0
        %593 = vmatpush.bf16.msra.mxu0 0
        %594 = vmatpush.bf16.msra.mxu0 0
        %595 = vmatpush.bf16.msra.mxu0 %v561
        %596 = vmatpush.bf16.msra.mxu0 %v560
        %597 = vmatmul.bf16.gmra.mxu0 %v566
        %v598 = vpop.f32.mrf.mxu0
        %v599 = vadd.f32 0.0, %v598
        %v600 = vpop.f32.mrf.mxu0
        %v601 = vadd.f32 0.0, %v600
        %602 = vmatmul.bf16.gmra.mxu0 %v569
        %v603 = vpop.f32.mrf.mxu0
        %v604 = vadd.f32 0.0, %v603
        %v605 = vpop.f32.mrf.mxu0
        %v606 = vadd.f32 0.0, %v605
        %607 = vmatmul.bf16.gmra.mxu0 %v572
        %v608 = vpop.f32.mrf.mxu0
        %v609 = vadd.f32 0.0, %v608
        %v610 = vpop.f32.mrf.mxu0
        %v611 = vadd.f32 0.0, %v610
        %612 = vmatmul.bf16.gmra.mxu0 %v575
        %v613 = vpop.f32.mrf.mxu0
        %v614 = vadd.f32 0.0, %v613
        %v615 = vpop.f32.mrf.mxu0
        %v616 = vadd.f32 0.0, %v615
        %617 = vmatmul.bf16.gmra.mxu0 %v578
        %v618 = vpop.f32.mrf.mxu0
        %v619 = vadd.f32 0.0, %v618
        %v620 = vpop.f32.mrf.mxu0
        %v621 = vadd.f32 0.0, %v620
        %622 = vmatmul.bf16.gmra.mxu0 %v581
        %v623 = vpop.f32.mrf.mxu0
        %v624 = vadd.f32 0.0, %v623
        %v625 = vpop.f32.mrf.mxu0
        %v626 = vadd.f32 0.0, %v625
        %627 = vmatmul.bf16.gmra.mxu0 %v584
        %v628 = vpop.f32.mrf.mxu0
        %v629 = vadd.f32 0.0, %v628
        %v630 = vpop.f32.mrf.mxu0
        %v631 = vadd.f32 0.0, %v630
        %632 = vmatmul.bf16.gmra.mxu0 %v587
        %v633 = vpop.f32.mrf.mxu0
        %v634 = vadd.f32 0.0, %v633
        %v635 = vpop.f32.mrf.mxu0
        %v636 = vadd.f32 0.0, %v635
        %637 = vdwg.mxu0
        %638 = vst [vmem:[%s297] sm:$0xff] %v599
        %639 = vst [vmem:[%s297 + $0x8] sm:$0xff] %v601
        %640 = vst [vmem:[%s297 + $0x10] sm:$0xff] %v604
        %641 = vst [vmem:[%s297 + $0x18] sm:$0xff] %v606
        %642 = vst [vmem:[%s297 + $0x20] sm:$0xff] %v609
        %643 = vst [vmem:[%s297 + $0x28] sm:$0xff] %v611
        %644 = vst [vmem:[%s297 + $0x30] sm:$0xff] %v614
        %645 = vst [vmem:[%s297 + $0x38] sm:$0xff] %v616
        %646 = vst [vmem:[%s297 + $0x40] sm:$0xff] %v619
        %647 = vst [vmem:[%s297 + $0x48] sm:$0xff] %v621
        %648 = vst [vmem:[%s297 + $0x50] sm:$0xff] %v624
        %649 = vst [vmem:[%s297 + $0x58] sm:$0xff] %v626
        %650 = vst [vmem:[%s297 + $0x60] sm:$0xff] %v629
        %651 = vst [vmem:[%s297 + $0x68] sm:$0xff] %v631
        %652 = vst [vmem:[%s297 + $0x70] sm:$0xff] %v634
        %653 = vst [vmem:[%s297 + $0x78] sm:$0xff] %v636
        %s654 = smul.u32 16, %s25
        %p655 = scmp.lt.s32.totalorder %s24, 1
        %s656 = scalar_select %p655, %s24, 1
        %p657 = scmp.lt.s32.totalorder %s654, 15
        %s658 = scalar_select %p657, %s654, 15
        %s659 = smul.addr %s656, 16
        %s660 = sadd.s32 %s658, %s659
        %s661 = smul.addr %s660, 4
        %s662 = scalar_lea.vmem %s4, %s661
        %s663 = sand.u32 %s176, 1
        %s664 = scalar_lea.sflag [#allocation3], %s663
        %s665 = sand.u32 %s176, 1
        %s666 = smul.addr %s665, 128
        %s667 = scalar_lea.vmem [#allocation2], %s666
        // Predicated region
        $region37: #{tpu_custom_call.1} parent=35 // pred_check
          %p668 = pneg %p158
        $region38: #{tpu_custom_call.1} parent=35 // pred_check_branch
          %670 = sbr.rel (%p668) target = $region40
        $region39: #{tpu_custom_call.1} parent=35 // pred_region
          %s671 = smul.u32 16, %s25
        $region40: #{tpu_custom_call.1} parent=35 // pred_fallthru
          _
        // Predicated region
        $region41: #{tpu_custom_call.1} parent=35 // pred_check
          %p672 = pneg %p186
        $region42: #{tpu_custom_call.1} parent=35 // pred_check_branch
          %674 = sbr.rel (%p672) target = $region44
        $region43: #{tpu_custom_call.1} parent=35 // pred_region
          %s675 = smul.u32 16, %s25
          %677 = vsyncadd %s664, 0
          %s678 = smul.addr %s24, 16
          %s679 = sadd.s32 %s675, %s678
          %s680 = smul.addr %s679, 8
          %s681 = scalar_lea.hbm %s5, %s680
          %s682 = sshll.u32 %s667, 4
          %s683 = int_to_ptr.vmem [resolvable:$true] %s682
          %s684 = sshll.u32 %s681, 4
          %s685 = int_to_ptr.hbm [resolvable:$true] %s684
          %690 = dma.vmem_to_hbm [thread:$0]  %s683, 2048, %s685, %s664, 128, 128, 8
        $region44: #{tpu_custom_call.1} parent=35 // pred_fallthru
          _
      $region36: #{tpu_custom_call.1} parent=5 // pred_fallthru
        _
      %p691 = scmp.le.s32.totalorder 2, %s15
      // Predicated region
      $region45: #{tpu_custom_call.1} parent=5 // pred_check
        %p692 = pneg %p691
      $region46: #{tpu_custom_call.1} parent=5 // pred_check_branch
        %694 = sbr.rel (%p692) target = $region48
      $region47: #{tpu_custom_call.1} parent=5 // pred_region
        %s695 = ssub.s32 %s15, 2
        // Predicated region
        $region49: #{tpu_custom_call.1} parent=47 // pred_check
          %p696 = pneg %p164
        $region50: #{tpu_custom_call.1} parent=47 // pred_check_branch
          %698 = sbr.rel (%p696) target = $region52
        $region51: #{tpu_custom_call.1} parent=47 // pred_region
          %s699 = smul.u32 16, %s27
          %p700 = scmp.lt.s32.totalorder %s26, 1
          %s701 = scalar_select %p700, %s26, 1
          %p702 = scmp.lt.s32.totalorder %s699, 15
          %s703 = scalar_select %p702, %s699, 15
          %s704 = smul.addr %s701, 16
          %s705 = sadd.s32 %s703, %s704
          %s706 = smul.addr %s705, 4
          %s707 = scalar_lea.vmem %s4, %s706
        $region52: #{tpu_custom_call.1} parent=47 // pred_fallthru
          _
        // Predicated region
        $region53: #{tpu_custom_call.1} parent=47 // pred_check
          %p708 = pneg %p192
        $region54: #{tpu_custom_call.1} parent=47 // pred_check_branch
          %710 = sbr.rel (%p708) target = $region56
        $region55: #{tpu_custom_call.1} parent=47 // pred_region
          %s711 = sand.u32 %s177, 1
          %s712 = scalar_lea.sflag [#allocation3], %s711
          %s713 = sand.u32 %s177, 1
          %s714 = smul.addr %s713, 128
          %s715 = scalar_lea.vmem [#allocation2], %s714
          %717 = dma.done %s712, 2048
        $region56: #{tpu_custom_call.1} parent=47 // pred_fallthru
          _
      $region48: #{tpu_custom_call.1} parent=5 // pred_fallthru
        _
    $region6: #{tpu_custom_call.1} parent=1 // loop_footer
      %s19 = sadd.s32 1, %s15
    $region7: #{tpu_custom_call.1} parent=1 // loop_footer_branch
      %14 = sbr.rel target = $region3
    $region8: #{tpu_custom_call.1} parent=1 // loop_exit
      _
    %718 = vsyncpa [#allocation3], 1
    %s719 = scalar_lea.sflag [#allocation3], 1
    %720 = vsyncpa %s719, 1

</llo_original>
